<compile_context>
chip_gen: v5e
topology: v5e:2x2
jax: 0.10.0
libtpu: 0.0.40
codegen_flags: <defaults>
</compile_context>

<pallas_src>
import functools

import jax
import jax.numpy as jnp
from jax.experimental import pallas as pl
from jax.experimental.pallas import tpu as pltpu

LANE = 128
SUBLANE_BF16 = 16  # bf16 batch tiles must be a multiple of 16 (sublane packing)


def _round_up(n, m):
    return ((n + m - 1) // m) * m


def _pad2(a, rows, cols):
    return jnp.pad(a, ((0, rows - a.shape[0]), (0, cols - a.shape[1])))


def mlp_kernel(x_ref,
               w1_ref, b1_ref,
               w2_ref, b2_ref,
               w3_ref, b3_ref,
               w4_ref, b4_ref,
               w5_ref, b5_ref,
               o_ref):
    """Fused 5-layer MLP forward for one batch tile. Weights/biases are
    VMEM-resident (constant index_map); x/out tiles stream over the batch grid."""
    h = x_ref[...]  # bf16 [tile_b, d_in]

    def dense(h, w_ref, b_ref, relu):
        # bf16 matmul on the MXU, f32 accumulation; bias-add / ReLU in f32 (VPU).
        y = jnp.dot(h, w_ref[...], preferred_element_type=jnp.float32) + b_ref[...]
        if relu:
            y = jnp.maximum(y, 0.0)
        return y

    h = dense(h, w1_ref, b1_ref, True).astype(jnp.bfloat16)
    h = dense(h, w2_ref, b2_ref, True).astype(jnp.bfloat16)
    h = dense(h, w3_ref, b3_ref, True).astype(jnp.bfloat16)
    h = dense(h, w4_ref, b4_ref, True).astype(jnp.bfloat16)
    out = dense(h, w5_ref, b5_ref, False)          # f32 [tile_b, 128] lane-dense
    o_ref[...] = out.astype(o_ref.dtype)


def prep_mlp_params(params):
    """One-time weight prep (hoisted out of the per-call path).

    params = [(W1, b1), ..., (W5, b5)] with W_i [in, out] (transposed vs. PyTorch)
    and b_i [out] or [1, out].  Casts weights to bf16, keeps biases f32, and
    zero-pads the last layer's columns to a lane-dense multiple of 128.
    Returns a flat tuple (W1, b1, ..., W5, b5) ready for mlp_forward.
    """
    prepped = []
    n_layers = len(params)
    for li, (w, b) in enumerate(params):
        w = jnp.asarray(w, jnp.float32)
        b = jnp.asarray(b, jnp.float32).reshape(1, -1)
        cols = _round_up(w.shape[1], LANE) if li == n_layers - 1 else w.shape[1]
        w_p = _pad2(w, w.shape[0], cols).astype(jnp.bfloat16)
        b_p = _pad2(b, 1, cols)                    # f32 bias
        prepped += [w_p, b_p]
    return tuple(prepped)


def _choose_tile_b(batch):
    bp = _round_up(batch, SUBLANE_BF16)
    if bp <= SUBLANE_BF16:
        return SUBLANE_BF16
    # Aim for >= 2 grid steps so ("parallel",) shards across both v7x TensorCores;
    # cap the tile to keep per-layer f32 pre-activations well inside the vreg file.
    return max(SUBLANE_BF16, min(256, _round_up(bp // 2, SUBLANE_BF16)))


@functools.partial(jax.jit, static_argnames=("out_dim", "tile_b"))
def mlp_forward(x, prepped, out_dim=1, tile_b=None):
    """x: [B, d_in] f32.  prepped: output of prep_mlp_params.  Returns f32 [B, out_dim]."""
    B, d_in = x.shape
    if tile_b is None:
        tile_b = _choose_tile_b(B)
    tile_b = _round_up(max(int(tile_b), SUBLANE_BF16), SUBLANE_BF16)
    batch_p = _round_up(B, tile_b)
    d_out_p = prepped[-1].shape[1]                 # lane-dense padded output width

    # Per-call prep is just a bf16 cast + batch pad of x (weights already prepped).
    x_p = x.astype(jnp.bfloat16)
    if batch_p != B:
        x_p = jnp.pad(x_p, ((0, batch_p - B), (0, 0)))

    in_specs = [pl.BlockSpec((tile_b, d_in), lambda i: (i, 0))]
    for a in prepped:
        # Constant index_map -> DMA'd once, held VMEM-resident across batch tiles.
        in_specs.append(pl.BlockSpec(a.shape, lambda i: (0, 0)))

    out_p = pl.pallas_call(
        mlp_kernel,
        out_shape=jax.ShapeDtypeStruct((batch_p, d_out_p), jnp.float32),
        grid=(batch_p // tile_b,),
        in_specs=in_specs,
        out_specs=pl.BlockSpec((tile_b, d_out_p), lambda i: (i, 0)),
        compiler_params=pltpu.CompilerParams(
            dimension_semantics=("parallel",)),
    )(x_p, *prepped)

    return out_p[:B, :out_dim]


def init_linear(key, in_dim, out_dim):
    """Deterministic init mimicking PyTorch nn.Linear default (uniform +/- 1/sqrt(in)).
    Weights stored as [in, out] (transposed relative to PyTorch's [out, in])."""
    kw, kb = jax.random.split(key)
    bound = 1.0 / jnp.sqrt(jnp.float32(in_dim))
    w = jax.random.uniform(kw, (in_dim, out_dim), jnp.float32, -bound, bound)
    b = jax.random.uniform(kb, (1, out_dim), jnp.float32, -bound, bound)
    return w, b


if __name__ == "__main__":
    # Shapes consistent with the module: batch=8, input_dim=32,
    # hidden_dim=256 (module default), output_dim=1.
    B, D_IN, HID, D_OUT = 8, 32, 256, 1

    key = jax.random.PRNGKey(0)
    k_x, k1, k2, k3, k4, k5 = jax.random.split(key, 6)

    x = jax.random.normal(k_x, (B, D_IN), jnp.float32)
    params = [
        init_linear(k1, D_IN, HID),
        init_linear(k2, HID, HID),
        init_linear(k3, HID, HID),
        init_linear(k4, HID, HID),
        init_linear(k5, HID, D_OUT),
    ]

    # One-time prep (hoisted out of the per-call path).
    prepped = jax.block_until_ready(prep_mlp_params(params))

    out = jax.block_until_ready(mlp_forward(x, prepped, out_dim=D_OUT))
    assert out.shape == (B, D_OUT)

    # Reference with the same numeric recipe (bf16 matmul operands, f32 accumulation,
    # f32 bias-add/ReLU) -> tight tolerance.
    h = x
    for i, (w, b) in enumerate(params):
        y = jnp.dot(h.astype(jnp.bfloat16), w.astype(jnp.bfloat16),
                    preferred_element_type=jnp.float32) + b
        h = jnp.maximum(y, 0.0) if i < len(params) - 1 else y
    ref_bf16 = h
    assert jnp.allclose(out, ref_bf16, atol=2e-3, rtol=2e-3), \
        float(jnp.max(jnp.abs(out - ref_bf16)))

    # Loose sanity check against the pure-f32 PyTorch-equivalent forward
    # (tolerance loosened because matmul operands are bf16 in the kernel).
    h = x
    for i, (w, b) in enumerate(params):
        h = h @ w + b
        if i < len(params) - 1:
            h = jnp.maximum(h, 0.0)
    assert jnp.allclose(out, h, atol=1e-1, rtol=1e-1)

    print("KERNEL_OK")
</pallas_src>

<mosaic_0001>
module attributes {stable_mosaic.version = 11 : i64} {
  func.func @mlp_kernel(%arg0: i32, %arg1: memref<16x32xbf16, #tpu.memory_space<vmem>>, %arg2: memref<32x256xbf16, #tpu.memory_space<vmem>>, %arg3: memref<1x256xf32, #tpu.memory_space<vmem>>, %arg4: memref<256x256xbf16, #tpu.memory_space<vmem>>, %arg5: memref<1x256xf32, #tpu.memory_space<vmem>>, %arg6: memref<256x256xbf16, #tpu.memory_space<vmem>>, %arg7: memref<1x256xf32, #tpu.memory_space<vmem>>, %arg8: memref<256x256xbf16, #tpu.memory_space<vmem>>, %arg9: memref<1x256xf32, #tpu.memory_space<vmem>>, %arg10: memref<256x128xbf16, #tpu.memory_space<vmem>>, %arg11: memref<1x128xf32, #tpu.memory_space<vmem>>, %arg12: memref<16x128xf32, #tpu.memory_space<vmem>>) attributes {dimension_semantics = [#tpu.dimension_semantics<parallel>], iteration_bounds = array<i64: 1>, scalar_prefetch = 0 : i64, scratch_operands = 0 : i64, tpu.core_type = #tpu.core_type<tc>, window_params = [{transform_indices = @transform_0, window_bounds = array<i64: 16, 32>}, {pipeline_mode = #tpu.pipeline_mode<synchronous>, transform_indices = @transform_1, window_bounds = array<i64: 32, 256>}, {pipeline_mode = #tpu.pipeline_mode<synchronous>, transform_indices = @transform_2, window_bounds = array<i64: 1, 256>}, {pipeline_mode = #tpu.pipeline_mode<synchronous>, transform_indices = @transform_3, window_bounds = array<i64: 256, 256>}, {pipeline_mode = #tpu.pipeline_mode<synchronous>, transform_indices = @transform_4, window_bounds = array<i64: 1, 256>}, {pipeline_mode = #tpu.pipeline_mode<synchronous>, transform_indices = @transform_5, window_bounds = array<i64: 256, 256>}, {pipeline_mode = #tpu.pipeline_mode<synchronous>, transform_indices = @transform_6, window_bounds = array<i64: 1, 256>}, {pipeline_mode = #tpu.pipeline_mode<synchronous>, transform_indices = @transform_7, window_bounds = array<i64: 256, 256>}, {pipeline_mode = #tpu.pipeline_mode<synchronous>, transform_indices = @transform_8, window_bounds = array<i64: 1, 256>}, {pipeline_mode = #tpu.pipeline_mode<synchronous>, transform_indices = @transform_9, window_bounds = array<i64: 256, 128>}, {pipeline_mode = #tpu.pipeline_mode<synchronous>, transform_indices = @transform_10, window_bounds = array<i64: 1, 128>}, {transform_indices = @transform_11, window_bounds = array<i64: 16, 128>}]} {
    %c0 = arith.constant 0 : index
    %c0_0 = arith.constant 0 : index
    %0 = vector.load %arg1[%c0, %c0_0] : memref<16x32xbf16, #tpu.memory_space<vmem>>, vector<16x32xbf16>
    %c0_1 = arith.constant 0 : index
    %c0_2 = arith.constant 0 : index
    %1 = vector.load %arg2[%c0_1, %c0_2] : memref<32x256xbf16, #tpu.memory_space<vmem>>, vector<32x256xbf16>
    %cst = arith.constant dense<0.000000e+00> : vector<16x256xf32>
    %2 = tpu.matmul %0, %1, %cst {dimension_numbers = #tpu.dot_dimension_numbers<[1], [0], [0], [1], [0, 0, 1, 1], [], []>} : vector<16x32xbf16>, vector<32x256xbf16>, vector<16x256xf32> -> vector<16x256xf32>
    %c0_3 = arith.constant 0 : index
    %c0_4 = arith.constant 0 : index
    %3 = vector.load %arg3[%c0_3, %c0_4] : memref<1x256xf32, #tpu.memory_space<vmem>>, vector<1x256xf32>
    %4 = vector.broadcast %3 : vector<1x256xf32> to vector<16x256xf32>
    %5 = arith.addf %2, %4 : vector<16x256xf32>
    %cst_5 = arith.constant 0.000000e+00 : f32
    %6 = vector.broadcast %cst_5 : f32 to vector<16x256xf32>
    %7 = arith.maximumf %5, %6 : vector<16x256xf32>
    %8 = arith.truncf %7 : vector<16x256xf32> to vector<16x256xbf16>
    %c0_6 = arith.constant 0 : index
    %c0_7 = arith.constant 0 : index
    %9 = vector.load %arg4[%c0_6, %c0_7] : memref<256x256xbf16, #tpu.memory_space<vmem>>, vector<256x256xbf16>
    %cst_8 = arith.constant dense<0.000000e+00> : vector<16x256xf32>
    %10 = tpu.matmul %8, %9, %cst_8 {dimension_numbers = #tpu.dot_dimension_numbers<[1], [0], [0], [1], [0, 0, 1, 1], [], []>} : vector<16x256xbf16>, vector<256x256xbf16>, vector<16x256xf32> -> vector<16x256xf32>
    %c0_9 = arith.constant 0 : index
    %c0_10 = arith.constant 0 : index
    %11 = vector.load %arg5[%c0_9, %c0_10] : memref<1x256xf32, #tpu.memory_space<vmem>>, vector<1x256xf32>
    %12 = vector.broadcast %11 : vector<1x256xf32> to vector<16x256xf32>
    %13 = arith.addf %10, %12 : vector<16x256xf32>
    %cst_11 = arith.constant 0.000000e+00 : f32
    %14 = vector.broadcast %cst_11 : f32 to vector<16x256xf32>
    %15 = arith.maximumf %13, %14 : vector<16x256xf32>
    %16 = arith.truncf %15 : vector<16x256xf32> to vector<16x256xbf16>
    %c0_12 = arith.constant 0 : index
    %c0_13 = arith.constant 0 : index
    %17 = vector.load %arg6[%c0_12, %c0_13] : memref<256x256xbf16, #tpu.memory_space<vmem>>, vector<256x256xbf16>
    %cst_14 = arith.constant dense<0.000000e+00> : vector<16x256xf32>
    %18 = tpu.matmul %16, %17, %cst_14 {dimension_numbers = #tpu.dot_dimension_numbers<[1], [0], [0], [1], [0, 0, 1, 1], [], []>} : vector<16x256xbf16>, vector<256x256xbf16>, vector<16x256xf32> -> vector<16x256xf32>
    %c0_15 = arith.constant 0 : index
    %c0_16 = arith.constant 0 : index
    %19 = vector.load %arg7[%c0_15, %c0_16] : memref<1x256xf32, #tpu.memory_space<vmem>>, vector<1x256xf32>
    %20 = vector.broadcast %19 : vector<1x256xf32> to vector<16x256xf32>
    %21 = arith.addf %18, %20 : vector<16x256xf32>
    %cst_17 = arith.constant 0.000000e+00 : f32
    %22 = vector.broadcast %cst_17 : f32 to vector<16x256xf32>
    %23 = arith.maximumf %21, %22 : vector<16x256xf32>
    %24 = arith.truncf %23 : vector<16x256xf32> to vector<16x256xbf16>
    %c0_18 = arith.constant 0 : index
    %c0_19 = arith.constant 0 : index
    %25 = vector.load %arg8[%c0_18, %c0_19] : memref<256x256xbf16, #tpu.memory_space<vmem>>, vector<256x256xbf16>
    %cst_20 = arith.constant dense<0.000000e+00> : vector<16x256xf32>
    %26 = tpu.matmul %24, %25, %cst_20 {dimension_numbers = #tpu.dot_dimension_numbers<[1], [0], [0], [1], [0, 0, 1, 1], [], []>} : vector<16x256xbf16>, vector<256x256xbf16>, vector<16x256xf32> -> vector<16x256xf32>
    %c0_21 = arith.constant 0 : index
    %c0_22 = arith.constant 0 : index
    %27 = vector.load %arg9[%c0_21, %c0_22] : memref<1x256xf32, #tpu.memory_space<vmem>>, vector<1x256xf32>
    %28 = vector.broadcast %27 : vector<1x256xf32> to vector<16x256xf32>
    %29 = arith.addf %26, %28 : vector<16x256xf32>
    %cst_23 = arith.constant 0.000000e+00 : f32
    %30 = vector.broadcast %cst_23 : f32 to vector<16x256xf32>
    %31 = arith.maximumf %29, %30 : vector<16x256xf32>
    %32 = arith.truncf %31 : vector<16x256xf32> to vector<16x256xbf16>
    %c0_24 = arith.constant 0 : index
    %c0_25 = arith.constant 0 : index
    %33 = vector.load %arg10[%c0_24, %c0_25] : memref<256x128xbf16, #tpu.memory_space<vmem>>, vector<256x128xbf16>
    %cst_26 = arith.constant dense<0.000000e+00> : vector<16x128xf32>
    %34 = tpu.matmul %32, %33, %cst_26 {dimension_numbers = #tpu.dot_dimension_numbers<[1], [0], [0], [1], [0, 0, 1, 1], [], []>} : vector<16x256xbf16>, vector<256x128xbf16>, vector<16x128xf32> -> vector<16x128xf32>
    %c0_27 = arith.constant 0 : index
    %c0_28 = arith.constant 0 : index
    %35 = vector.load %arg11[%c0_27, %c0_28] : memref<1x128xf32, #tpu.memory_space<vmem>>, vector<1x128xf32>
    %36 = vector.broadcast %35 : vector<1x128xf32> to vector<16x128xf32>
    %37 = arith.addf %34, %36 : vector<16x128xf32>
    %c0_29 = arith.constant 0 : index
    %c0_30 = arith.constant 0 : index
    %38 = vector.load %arg12[%c0_29, %c0_30] : memref<16x128xf32, #tpu.memory_space<vmem>>, vector<16x128xf32>
    tpu.vector_store %arg12[%c0_29, %c0_30], %37 {strides = array<i32>} : memref<16x128xf32, #tpu.memory_space<vmem>>, vector<16x128xf32>,
    return
  }
  func.func @transform_0(%arg0: i32) -> (i32, i32) {
    %c0_i32 = arith.constant 0 : i32
    %c0_i32_0 = arith.constant 0 : i32
    return %arg0, %c0_i32 : i32, i32
  }
  func.func @transform_1(%arg0: i32) -> (i32, i32) {
    %c0_i32 = arith.constant 0 : i32
    %c0_i32_0 = arith.constant 0 : i32
    %c0_i32_1 = arith.constant 0 : i32
    return %c0_i32, %c0_i32_0 : i32, i32
  }
  func.func @transform_2(%arg0: i32) -> (i32, i32) {
    %c0_i32 = arith.constant 0 : i32
    %c0_i32_0 = arith.constant 0 : i32
    %c0_i32_1 = arith.constant 0 : i32
    return %c0_i32, %c0_i32_0 : i32, i32
  }
  func.func @transform_3(%arg0: i32) -> (i32, i32) {
    %c0_i32 = arith.constant 0 : i32
    %c0_i32_0 = arith.constant 0 : i32
    %c0_i32_1 = arith.constant 0 : i32
    return %c0_i32, %c0_i32_0 : i32, i32
  }
  func.func @transform_4(%arg0: i32) -> (i32, i32) {
    %c0_i32 = arith.constant 0 : i32
    %c0_i32_0 = arith.constant 0 : i32
    %c0_i32_1 = arith.constant 0 : i32
    return %c0_i32, %c0_i32_0 : i32, i32
  }
  func.func @transform_5(%arg0: i32) -> (i32, i32) {
    %c0_i32 = arith.constant 0 : i32
    %c0_i32_0 = arith.constant 0 : i32
    %c0_i32_1 = arith.constant 0 : i32
    return %c0_i32, %c0_i32_0 : i32, i32
  }
  func.func @transform_6(%arg0: i32) -> (i32, i32) {
    %c0_i32 = arith.constant 0 : i32
    %c0_i32_0 = arith.constant 0 : i32
    %c0_i32_1 = arith.constant 0 : i32
    return %c0_i32, %c0_i32_0 : i32, i32
  }
  func.func @transform_7(%arg0: i32) -> (i32, i32) {
    %c0_i32 = arith.constant 0 : i32
    %c0_i32_0 = arith.constant 0 : i32
    %c0_i32_1 = arith.constant 0 : i32
    return %c0_i32, %c0_i32_0 : i32, i32
  }
  func.func @transform_8(%arg0: i32) -> (i32, i32) {
    %c0_i32 = arith.constant 0 : i32
    %c0_i32_0 = arith.constant 0 : i32
    %c0_i32_1 = arith.constant 0 : i32
    return %c0_i32, %c0_i32_0 : i32, i32
  }
  func.func @transform_9(%arg0: i32) -> (i32, i32) {
    %c0_i32 = arith.constant 0 : i32
    %c0_i32_0 = arith.constant 0 : i32
    %c0_i32_1 = arith.constant 0 : i32
    return %c0_i32, %c0_i32_0 : i32, i32
  }
  func.func @transform_10(%arg0: i32) -> (i32, i32) {
    %c0_i32 = arith.constant 0 : i32
    %c0_i32_0 = arith.constant 0 : i32
    %c0_i32_1 = arith.constant 0 : i32
    return %c0_i32, %c0_i32_0 : i32, i32
  }
  func.func @transform_11(%arg0: i32) -> (i32, i32) {
    %c0_i32 = arith.constant 0 : i32
    %c0_i32_0 = arith.constant 0 : i32
    return %arg0, %c0_i32 : i32, i32
  }
}

</mosaic_0001>

<llo_original>
// kernel: mlp_forward.1
$region0: #{mlp_forward.1}
  #allocation0 [shape = 'u32[]', space=smem, size = 0x4, offset = 0x4, fixed_abs, tag = 'smem constant byte address 0x4 - core index']
  #allocation1 [shape = 'u32[72,128]{1,0:T(1,128)}', space=vmem, size = 0x9000, scoped, tag = 'internal scratch']
  %s0 = inlined_call_operand.vmem [shape: bf16[16,32], index: 0, kind: input, shape index: {}]
  %s1 = inlined_call_operand.hbm [shape: bf16[32,256], index: 1, kind: input, shape index: {}]
  %s2 = inlined_call_operand.vmem [shape: f32[1,256], index: 2, kind: input, shape index: {}]
  %s3 = inlined_call_operand.hbm [shape: bf16[256,256], index: 3, kind: input, shape index: {}]
  %s4 = inlined_call_operand.vmem [shape: f32[1,256], index: 4, kind: input, shape index: {}]
  %s5 = inlined_call_operand.hbm [shape: bf16[256,256], index: 5, kind: input, shape index: {}]
  %s6 = inlined_call_operand.vmem [shape: f32[1,256], index: 6, kind: input, shape index: {}]
  %s7 = inlined_call_operand.hbm [shape: bf16[256,256], index: 7, kind: input, shape index: {}]
  %s8 = inlined_call_operand.vmem [shape: f32[1,256], index: 8, kind: input, shape index: {}]
  %s9 = inlined_call_operand.hbm [shape: bf16[256,128], index: 9, kind: input, shape index: {}]
  %s10 = inlined_call_operand.vmem [shape: f32[1,128], index: 10, kind: input, shape index: {}]
  %s11 = inlined_call_operand.vmem [shape: f32[16,128], index: 11, kind: output, shape index: {}]
  %s12 = sld [smem:[#allocation0]]
  $region74: #{mlp_forward.1} parent=0
    _
  %s14 = ssub.s32 1, %s12
  %s15 = scalar_select 0, %s14, %s12
  $region1: #{mlp_forward.1} parent=0
    #allocation2 [shape = 'u8[16384]{0}', space=vmem, size = 0x4000, scoped, tag = 'input window, operand 1, single buffered']
    #allocation3 [shape = 's32[1]{0}', space=sflag, size = 0x4, scoped, tag = 'scoped memory for mlp_forward.1']
    #allocation4 [shape = 'u8[131072]{0}', space=vmem, size = 0x20000, scoped, tag = 'input window, operand 3, single buffered']
    #allocation5 [shape = 's32[1]{0}', space=sflag, size = 0x4, scoped, tag = 'scoped memory for mlp_forward.1']
    #allocation6 [shape = 'u8[131072]{0}', space=vmem, size = 0x20000, scoped, tag = 'input window, operand 5, single buffered']
    #allocation7 [shape = 'u8[131072]{0}', space=vmem, size = 0x20000, scoped, tag = 'input window, operand 7, single buffered']
    #allocation8 [shape = 's32[1]{0}', space=sflag, size = 0x4, scoped, tag = 'scoped memory for mlp_forward.1']
    #allocation9 [shape = 'u8[65536]{0}', space=vmem, size = 0x10000, scoped, tag = 'input window, operand 9, single buffered']
    %16 = vsyncpa [#allocation3], 0
    %17 = vsyncpa [#allocation5], 0
    %18 = vsyncpa [#allocation8], 0
    // Predicated region
    $region2: #{mlp_forward.1} parent=1 // pred_check
      _
    $region3: #{mlp_forward.1} parent=1 // pred_check_branch
      %20 = sbr.rel (0) target = $region5
    $region4: #{mlp_forward.1} parent=1 // pred_region
      _
    $region5: #{mlp_forward.1} parent=1 // pred_fallthru
      _
    // Predicated region
    $region6: #{mlp_forward.1} parent=1 // pred_check
      _
    $region7: #{mlp_forward.1} parent=1 // pred_check_branch
      %22 = sbr.rel (0) target = $region9
    $region8: #{mlp_forward.1} parent=1 // pred_region
      %24 = vsyncadd [#allocation3], 0
      %s25 = sshll.u32 %s1, 4
      %s26 = int_to_ptr.hbm [resolvable:$true] %s25
      %s27 = sshll.u32 [#allocation2], 4
      %s28 = int_to_ptr.vmem [resolvable:$true] %s27
      %33 = dma.hbm_to_vmem [thread:$0]  %s26, 512, %s28, [#allocation3], 128, 128, 8
    $region9: #{mlp_forward.1} parent=1 // pred_fallthru
      _
    // Predicated region
    $region10: #{mlp_forward.1} parent=1 // pred_check
      _
    $region11: #{mlp_forward.1} parent=1 // pred_check_branch
      %35 = sbr.rel (0) target = $region13
    $region12: #{mlp_forward.1} parent=1 // pred_region
      _
    $region13: #{mlp_forward.1} parent=1 // pred_fallthru
      _
    // Predicated region
    $region14: #{mlp_forward.1} parent=1 // pred_check
      _
    $region15: #{mlp_forward.1} parent=1 // pred_check_branch
      %37 = sbr.rel (0) target = $region17
    $region16: #{mlp_forward.1} parent=1 // pred_region
      %39 = vsyncadd [#allocation5], 0
      %s40 = sshll.u32 %s3, 4
      %s41 = int_to_ptr.hbm [resolvable:$true] %s40
      %s42 = sshll.u32 [#allocation4], 4
      %s43 = int_to_ptr.vmem [resolvable:$true] %s42
      %48 = dma.hbm_to_vmem [thread:$0]  %s41, 4096, %s43, [#allocation5], 128, 128, 8
    $region17: #{mlp_forward.1} parent=1 // pred_fallthru
      _
    // Predicated region
    $region18: #{mlp_forward.1} parent=1 // pred_check
      _
    $region19: #{mlp_forward.1} parent=1 // pred_check_branch
      %50 = sbr.rel (0) target = $region21
    $region20: #{mlp_forward.1} parent=1 // pred_region
      _
    $region21: #{mlp_forward.1} parent=1 // pred_fallthru
      _
    // Predicated region
    $region22: #{mlp_forward.1} parent=1 // pred_check
      _
    $region23: #{mlp_forward.1} parent=1 // pred_check_branch
      %52 = sbr.rel (0) target = $region25
    $region24: #{mlp_forward.1} parent=1 // pred_region
      %54 = vsyncadd [#allocation5], 0
      %s55 = sshll.u32 %s5, 4
      %s56 = int_to_ptr.hbm [resolvable:$true] %s55
      %s57 = sshll.u32 [#allocation6], 4
      %s58 = int_to_ptr.vmem [resolvable:$true] %s57
      %63 = dma.hbm_to_vmem [thread:$0]  %s56, 4096, %s58, [#allocation5], 128, 128, 8
    $region25: #{mlp_forward.1} parent=1 // pred_fallthru
      _
    // Predicated region
    $region26: #{mlp_forward.1} parent=1 // pred_check
      _
    $region27: #{mlp_forward.1} parent=1 // pred_check_branch
      %65 = sbr.rel (0) target = $region29
    $region28: #{mlp_forward.1} parent=1 // pred_region
      _
    $region29: #{mlp_forward.1} parent=1 // pred_fallthru
      _
    // Predicated region
    $region30: #{mlp_forward.1} parent=1 // pred_check
      _
    $region31: #{mlp_forward.1} parent=1 // pred_check_branch
      %67 = sbr.rel (0) target = $region33
    $region32: #{mlp_forward.1} parent=1 // pred_region
      %69 = vsyncadd [#allocation8], 0
      %s70 = sshll.u32 %s7, 4
      %s71 = int_to_ptr.hbm [resolvable:$true] %s70
      %s72 = sshll.u32 [#allocation7], 4
      %s73 = int_to_ptr.vmem [resolvable:$true] %s72
      %78 = dma.hbm_to_vmem [thread:$0]  %s71, 4096, %s73, [#allocation8], 128, 128, 8
    $region33: #{mlp_forward.1} parent=1 // pred_fallthru
      _
    // Predicated region
    $region34: #{mlp_forward.1} parent=1 // pred_check
      _
    $region35: #{mlp_forward.1} parent=1 // pred_check_branch
      %80 = sbr.rel (0) target = $region37
    $region36: #{mlp_forward.1} parent=1 // pred_region
      _
    $region37: #{mlp_forward.1} parent=1 // pred_fallthru
      _
    // Predicated region
    $region38: #{mlp_forward.1} parent=1 // pred_check
      _
    $region39: #{mlp_forward.1} parent=1 // pred_check_branch
      %82 = sbr.rel (0) target = $region41
    $region40: #{mlp_forward.1} parent=1 // pred_region
      %84 = vsyncadd [#allocation8], 0
      %s85 = sshll.u32 %s9, 4
      %s86 = int_to_ptr.hbm [resolvable:$true] %s85
      %s87 = sshll.u32 [#allocation9], 4
      %s88 = int_to_ptr.vmem [resolvable:$true] %s87
      %93 = dma.hbm_to_vmem [thread:$0]  %s86, 2048, %s88, [#allocation8], 64, 64, 4
    $region41: #{mlp_forward.1} parent=1 // pred_fallthru
      _
    // Predicated region
    $region42: #{mlp_forward.1} parent=1 // pred_check
      _
    $region43: #{mlp_forward.1} parent=1 // pred_check_branch
      %95 = sbr.rel (0) target = $region45
    $region44: #{mlp_forward.1} parent=1 // pred_region
      _
    $region45: #{mlp_forward.1} parent=1 // pred_fallthru
      _
    // Predicated region
    $region46: #{mlp_forward.1} parent=1 // pred_check
      _
    $region47: #{mlp_forward.1} parent=1 // pred_check_branch
      %97 = sbr.rel (0) target = $region49
    $region48: #{mlp_forward.1} parent=1 // pred_region
      %99 = dma.done [#allocation3], 512
    $region49: #{mlp_forward.1} parent=1 // pred_fallthru
      _
    // Predicated region
    $region50: #{mlp_forward.1} parent=1 // pred_check
      _
    $region51: #{mlp_forward.1} parent=1 // pred_check_branch
      %101 = sbr.rel (0) target = $region53
    $region52: #{mlp_forward.1} parent=1 // pred_region
      %103 = dma.done [#allocation5], 4096
    $region53: #{mlp_forward.1} parent=1 // pred_fallthru
      _
    // Predicated region
    $region54: #{mlp_forward.1} parent=1 // pred_check
      _
    $region55: #{mlp_forward.1} parent=1 // pred_check_branch
      %105 = sbr.rel (0) target = $region57
    $region56: #{mlp_forward.1} parent=1 // pred_region
      %107 = dma.done [#allocation5], 4096
    $region57: #{mlp_forward.1} parent=1 // pred_fallthru
      _
    // Predicated region
    $region58: #{mlp_forward.1} parent=1 // pred_check
      _
    $region59: #{mlp_forward.1} parent=1 // pred_check_branch
      %109 = sbr.rel (0) target = $region61
    $region60: #{mlp_forward.1} parent=1 // pred_region
      %111 = dma.done [#allocation8], 4096
    $region61: #{mlp_forward.1} parent=1 // pred_fallthru
      _
    // Predicated region
    $region62: #{mlp_forward.1} parent=1 // pred_check
      _
    $region63: #{mlp_forward.1} parent=1 // pred_check_branch
      %113 = sbr.rel (0) target = $region65
    $region64: #{mlp_forward.1} parent=1 // pred_region
      %115 = dma.done [#allocation8], 2048
    $region65: #{mlp_forward.1} parent=1 // pred_fallthru
      _
    %v117 = vld [vmem:[%s0] sm:$0xf]
    %v118 = vld [vmem:[%s0 + $0x4] sm:$0xf]
    %v119 = vld [vmem:[#allocation2] sm:$0xff]
    %v120 = vld [vmem:[#allocation2 + $0x8] sm:$0xff]
    %v121 = vld [vmem:[#allocation2 + $0x10] sm:$0xff]
    %v122 = vld [vmem:[#allocation2 + $0x18] sm:$0xff]
    %v123 = vld [vmem:[%s2] sm:$0x3]
    %v125 = vperm.slane %v123, 0
    %v126 = vperm.slane %v123, 1
    %v131 = vunpack.c.l.b16 %v117
    %v132 = vunpack.c.l.b16 %v118
    %v133 = vpack.c.b16 %v132, %v131
    %v138 = vunpack.c.l.b16 %v119
    %v139 = vunpack.c.h.b16 %v119
    %v140 = vunpack.c.l.b16 %v120
    %v141 = vunpack.c.h.b16 %v120
    %v142 = vunpack.c.l.b16 %v121
    %v143 = vunpack.c.h.b16 %v121
    %v144 = vunpack.c.l.b16 %v122
    %v145 = vunpack.c.h.b16 %v122
    %v146 = vpack.c.b16 %v140, %v138
    %v147 = vpack.c.b16 %v141, %v139
    %v148 = vpack.c.b16 %v144, %v142
    %v149 = vpack.c.b16 %v145, %v143
    %vm154 = vcmask 261120
    %v156 = vsel %vm154, %v133, 0
    %158 = vmatpush.bf16.msra.mxu0 0
    %159 = vmatpush.bf16.msra.mxu0 0
    %160 = vmatpush.bf16.msra.mxu0 0
    %161 = vmatpush.bf16.msra.mxu0 0
    %162 = vmatpush.bf16.msra.mxu0 0
    %163 = vmatpush.bf16.msra.mxu0 0
    %164 = vmatpush.bf16.msra.mxu0 %v148
    %165 = vmatpush.bf16.msra.mxu0 %v146
    %166 = vmatmul.bf16.gmra.mxu0 %v156
    %v167 = vpop.f32.mrf.mxu0
    %v168 = vadd.f32 %v125, %v167
    %v169 = vpop.f32.mrf.mxu0
    %v170 = vadd.f32 %v125, %v169
    %171 = vdwg.mxu0
    %172 = vmatpush.bf16.msra.mxu0 0
    %173 = vmatpush.bf16.msra.mxu0 0
    %174 = vmatpush.bf16.msra.mxu0 0
    %175 = vmatpush.bf16.msra.mxu0 0
    %176 = vmatpush.bf16.msra.mxu0 0
    %177 = vmatpush.bf16.msra.mxu0 0
    %178 = vmatpush.bf16.msra.mxu0 %v149
    %179 = vmatpush.bf16.msra.mxu0 %v147
    %180 = vmatmul.bf16.gmra.mxu0 %v156
    %v181 = vpop.f32.mrf.mxu0
    %v182 = vadd.f32 %v126, %v181
    %v183 = vpop.f32.mrf.mxu0
    %v184 = vadd.f32 %v126, %v183
    %185 = vdwg.mxu0
    %v186 = vmax.f32 %v168, 0.0
    %v187 = vmax.f32 %v182, 0.0
    %v188 = vmax.f32 %v170, 0.0
    %v189 = vmax.f32 %v184, 0.0
    %v190 = vpack.c.bf16 %v188, %v186
    %v191 = vpack.c.bf16 %v189, %v187
    %v192 = vld [vmem:[#allocation4] sm:$0xff]
    %v193 = vld [vmem:[#allocation4 + $0x8] sm:$0xff]
    %v194 = vld [vmem:[#allocation4 + $0x10] sm:$0xff]
    %v195 = vld [vmem:[#allocation4 + $0x18] sm:$0xff]
    %v196 = vld [vmem:[#allocation4 + $0x20] sm:$0xff]
    %v197 = vld [vmem:[#allocation4 + $0x28] sm:$0xff]
    %v198 = vld [vmem:[#allocation4 + $0x30] sm:$0xff]
    %v199 = vld [vmem:[#allocation4 + $0x38] sm:$0xff]
    %v200 = vld [vmem:[#allocation4 + $0x40] sm:$0xff]
    %v201 = vld [vmem:[#allocation4 + $0x48] sm:$0xff]
    %v202 = vld [vmem:[#allocation4 + $0x50] sm:$0xff]
    %v203 = vld [vmem:[#allocation4 + $0x58] sm:$0xff]
    %v204 = vld [vmem:[#allocation4 + $0x60] sm:$0xff]
    %v205 = vld [vmem:[#allocation4 + $0x68] sm:$0xff]
    %v206 = vld [vmem:[#allocation4 + $0x70] sm:$0xff]
    %v207 = vld [vmem:[#allocation4 + $0x78] sm:$0xff]
    %v208 = vld [vmem:[#allocation4 + $0x80] sm:$0xff]
    %v209 = vld [vmem:[#allocation4 + $0x88] sm:$0xff]
    %v210 = vld [vmem:[#allocation4 + $0x90] sm:$0xff]
    %v211 = vld [vmem:[#allocation4 + $0x98] sm:$0xff]
    %v212 = vld [vmem:[#allocation4 + $0xa0] sm:$0xff]
    %v213 = vld [vmem:[#allocation4 + $0xa8] sm:$0xff]
    %v214 = vld [vmem:[#allocation4 + $0xb0] sm:$0xff]
    %v215 = vld [vmem:[#allocation4 + $0xb8] sm:$0xff]
    %v216 = vld [vmem:[#allocation4 + $0xc0] sm:$0xff]
    %v217 = vld [vmem:[#allocation4 + $0xc8] sm:$0xff]
    %v218 = vld [vmem:[#allocation4 + $0xd0] sm:$0xff]
    %v219 = vld [vmem:[#allocation4 + $0xd8] sm:$0xff]
    %v220 = vld [vmem:[#allocation4 + $0xe0] sm:$0xff]
    %v221 = vld [vmem:[#allocation4 + $0xe8] sm:$0xff]
    %v222 = vld [vmem:[#allocation4 + $0xf0] sm:$0xff]
    %v223 = vld [vmem:[#allocation4 + $0xf8] sm:$0xff]
    %v224 = vld [vmem:[%s4] sm:$0x3]
    %v226 = vperm.slane %v224, 0
    %v227 = vperm.slane %v224, 1
    %v262 = vunpack.c.l.b16 %v192
    %v263 = vunpack.c.h.b16 %v192
    %v264 = vunpack.c.l.b16 %v193
    %v265 = vunpack.c.h.b16 %v193
    %v266 = vunpack.c.l.b16 %v194
    %v267 = vunpack.c.h.b16 %v194
    %v268 = vunpack.c.l.b16 %v195
    %v269 = vunpack.c.h.b16 %v195
    %v270 = vunpack.c.l.b16 %v196
    %v271 = vunpack.c.h.b16 %v196
    %v272 = vunpack.c.l.b16 %v197
    %v273 = vunpack.c.h.b16 %v197
    %v274 = vunpack.c.l.b16 %v198
    %v275 = vunpack.c.h.b16 %v198
    %v276 = vunpack.c.l.b16 %v199
    %v277 = vunpack.c.h.b16 %v199
    %v278 = vunpack.c.l.b16 %v200
    %v279 = vunpack.c.h.b16 %v200
    %v280 = vunpack.c.l.b16 %v201
    %v281 = vunpack.c.h.b16 %v201
    %v282 = vunpack.c.l.b16 %v202
    %v283 = vunpack.c.h.b16 %v202
    %v284 = vunpack.c.l.b16 %v203
    %v285 = vunpack.c.h.b16 %v203
    %v286 = vunpack.c.l.b16 %v204
    %v287 = vunpack.c.h.b16 %v204
    %v288 = vunpack.c.l.b16 %v205
    %v289 = vunpack.c.h.b16 %v205
    %v290 = vunpack.c.l.b16 %v206
    %v291 = vunpack.c.h.b16 %v206
    %v292 = vunpack.c.l.b16 %v207
    %v293 = vunpack.c.h.b16 %v207
    %v294 = vunpack.c.l.b16 %v208
    %v295 = vunpack.c.h.b16 %v208
    %v296 = vunpack.c.l.b16 %v209
    %v297 = vunpack.c.h.b16 %v209
    %v298 = vunpack.c.l.b16 %v210
    %v299 = vunpack.c.h.b16 %v210
    %v300 = vunpack.c.l.b16 %v211
    %v301 = vunpack.c.h.b16 %v211
    %v302 = vunpack.c.l.b16 %v212
    %v303 = vunpack.c.h.b16 %v212
    %v304 = vunpack.c.l.b16 %v213
    %v305 = vunpack.c.h.b16 %v213
    %v306 = vunpack.c.l.b16 %v214
    %v307 = vunpack.c.h.b16 %v214
    %v308 = vunpack.c.l.b16 %v215
    %v309 = vunpack.c.h.b16 %v215
    %v310 = vunpack.c.l.b16 %v216
    %v311 = vunpack.c.h.b16 %v216
    %v312 = vunpack.c.l.b16 %v217
    %v313 = vunpack.c.h.b16 %v217
    %v314 = vunpack.c.l.b16 %v218
    %v315 = vunpack.c.h.b16 %v218
    %v316 = vunpack.c.l.b16 %v219
    %v317 = vunpack.c.h.b16 %v219
    %v318 = vunpack.c.l.b16 %v220
    %v319 = vunpack.c.h.b16 %v220
    %v320 = vunpack.c.l.b16 %v221
    %v321 = vunpack.c.h.b16 %v221
    %v322 = vunpack.c.l.b16 %v222
    %v323 = vunpack.c.h.b16 %v222
    %v324 = vunpack.c.l.b16 %v223
    %v325 = vunpack.c.h.b16 %v223
    %v326 = vpack.c.b16 %v264, %v262
    %v327 = vpack.c.b16 %v265, %v263
    %v328 = vpack.c.b16 %v268, %v266
    %v329 = vpack.c.b16 %v269, %v267
    %v330 = vpack.c.b16 %v272, %v270
    %v331 = vpack.c.b16 %v273, %v271
    %v332 = vpack.c.b16 %v276, %v274
    %v333 = vpack.c.b16 %v277, %v275
    %v334 = vpack.c.b16 %v280, %v278
    %v335 = vpack.c.b16 %v281, %v279
    %v336 = vpack.c.b16 %v284, %v282
    %v337 = vpack.c.b16 %v285, %v283
    %v338 = vpack.c.b16 %v288, %v286
    %v339 = vpack.c.b16 %v289, %v287
    %v340 = vpack.c.b16 %v292, %v290
    %v341 = vpack.c.b16 %v293, %v291
    %v342 = vpack.c.b16 %v296, %v294
    %v343 = vpack.c.b16 %v297, %v295
    %v344 = vpack.c.b16 %v300, %v298
    %v345 = vpack.c.b16 %v301, %v299
    %v346 = vpack.c.b16 %v304, %v302
    %v347 = vpack.c.b16 %v305, %v303
    %v348 = vpack.c.b16 %v308, %v306
    %v349 = vpack.c.b16 %v309, %v307
    %v350 = vpack.c.b16 %v312, %v310
    %v351 = vpack.c.b16 %v313, %v311
    %v352 = vpack.c.b16 %v316, %v314
    %v353 = vpack.c.b16 %v317, %v315
    %v354 = vpack.c.b16 %v320, %v318
    %v355 = vpack.c.b16 %v321, %v319
    %v356 = vpack.c.b16 %v324, %v322
    %v357 = vpack.c.b16 %v325, %v323
    %390 = vmatpush.bf16.msra.mxu0 %v340
    %391 = vmatpush.bf16.msra.mxu0 %v338
    %392 = vmatpush.bf16.msra.mxu0 %v336
    %393 = vmatpush.bf16.msra.mxu0 %v334
    %394 = vmatpush.bf16.msra.mxu0 %v332
    %395 = vmatpush.bf16.msra.mxu0 %v330
    %396 = vmatpush.bf16.msra.mxu0 %v328
    %397 = vmatpush.bf16.msra.mxu0 %v326
    %398 = vmatmul.bf16.gmra.mxu0 %v190
    %v399 = vpop.f32.mrf.mxu0
    %v400 = vadd.f32 %v226, %v399
    %v401 = vpop.f32.mrf.mxu0
    %v402 = vadd.f32 %v226, %v401
    %403 = vdwg.mxu0
    %404 = vmatpush.bf16.msra.mxu0 %v356
    %405 = vmatpush.bf16.msra.mxu0 %v354
    %406 = vmatpush.bf16.msra.mxu0 %v352
    %407 = vmatpush.bf16.msra.mxu0 %v350
    %408 = vmatpush.bf16.msra.mxu0 %v348
    %409 = vmatpush.bf16.msra.mxu0 %v346
    %410 = vmatpush.bf16.msra.mxu0 %v344
    %411 = vmatpush.bf16.msra.mxu0 %v342
    %412 = vmatmul.bf16.gmra.mxu0 %v191
    %v413 = vpop.f32.mrf.mxu0
    %v414 = vadd.f32 %v400, %v413
    %v415 = vpop.f32.mrf.mxu0
    %v416 = vadd.f32 %v402, %v415
    %417 = vdwg.mxu0
    %418 = vmatpush.bf16.msra.mxu0 %v341
    %419 = vmatpush.bf16.msra.mxu0 %v339
    %420 = vmatpush.bf16.msra.mxu0 %v337
    %421 = vmatpush.bf16.msra.mxu0 %v335
    %422 = vmatpush.bf16.msra.mxu0 %v333
    %423 = vmatpush.bf16.msra.mxu0 %v331
    %424 = vmatpush.bf16.msra.mxu0 %v329
    %425 = vmatpush.bf16.msra.mxu0 %v327
    %426 = vmatmul.bf16.gmra.mxu0 %v190
    %v427 = vpop.f32.mrf.mxu0
    %v428 = vadd.f32 %v227, %v427
    %v429 = vpop.f32.mrf.mxu0
    %v430 = vadd.f32 %v227, %v429
    %431 = vdwg.mxu0
    %432 = vmatpush.bf16.msra.mxu0 %v357
    %433 = vmatpush.bf16.msra.mxu0 %v355
    %434 = vmatpush.bf16.msra.mxu0 %v353
    %435 = vmatpush.bf16.msra.mxu0 %v351
    %436 = vmatpush.bf16.msra.mxu0 %v349
    %437 = vmatpush.bf16.msra.mxu0 %v347
    %438 = vmatpush.bf16.msra.mxu0 %v345
    %439 = vmatpush.bf16.msra.mxu0 %v343
    %440 = vmatmul.bf16.gmra.mxu0 %v191
    %v441 = vpop.f32.mrf.mxu0
    %v442 = vadd.f32 %v428, %v441
    %v443 = vpop.f32.mrf.mxu0
    %v444 = vadd.f32 %v430, %v443
    %445 = vdwg.mxu0
    %v446 = vmax.f32 %v414, 0.0
    %v447 = vmax.f32 %v442, 0.0
    %v448 = vmax.f32 %v416, 0.0
    %v449 = vmax.f32 %v444, 0.0
    %v450 = vpack.c.bf16 %v448, %v446
    %v451 = vpack.c.bf16 %v449, %v447
    %v452 = vld [vmem:[#allocation6] sm:$0xff]
    %v453 = vld [vmem:[#allocation6 + $0x8] sm:$0xff]
    %v454 = vld [vmem:[#allocation6 + $0x10] sm:$0xff]
    %v455 = vld [vmem:[#allocation6 + $0x18] sm:$0xff]
    %v456 = vld [vmem:[#allocation6 + $0x20] sm:$0xff]
    %v457 = vld [vmem:[#allocation6 + $0x28] sm:$0xff]
    %v458 = vld [vmem:[#allocation6 + $0x30] sm:$0xff]
    %v459 = vld [vmem:[#allocation6 + $0x38] sm:$0xff]
    %v460 = vld [vmem:[#allocation6 + $0x40] sm:$0xff]
    %v461 = vld [vmem:[#allocation6 + $0x48] sm:$0xff]
    %v462 = vld [vmem:[#allocation6 + $0x50] sm:$0xff]
    %v463 = vld [vmem:[#allocation6 + $0x58] sm:$0xff]
    %v464 = vld [vmem:[#allocation6 + $0x60] sm:$0xff]
    %v465 = vld [vmem:[#allocation6 + $0x68] sm:$0xff]
    %v466 = vld [vmem:[#allocation6 + $0x70] sm:$0xff]
    %v467 = vld [vmem:[#allocation6 + $0x78] sm:$0xff]
    %v468 = vld [vmem:[#allocation6 + $0x80] sm:$0xff]
    %v469 = vld [vmem:[#allocation6 + $0x88] sm:$0xff]
    %v470 = vld [vmem:[#allocation6 + $0x90] sm:$0xff]
    %v471 = vld [vmem:[#allocation6 + $0x98] sm:$0xff]
    %v472 = vld [vmem:[#allocation6 + $0xa0] sm:$0xff]
    %v473 = vld [vmem:[#allocation6 + $0xa8] sm:$0xff]
    %v474 = vld [vmem:[#allocation6 + $0xb0] sm:$0xff]
    %v475 = vld [vmem:[#allocation6 + $0xb8] sm:$0xff]
    %v476 = vld [vmem:[#allocation6 + $0xc0] sm:$0xff]
    %v477 = vld [vmem:[#allocation6 + $0xc8] sm:$0xff]
    %v478 = vld [vmem:[#allocation6 + $0xd0] sm:$0xff]
    %v479 = vld [vmem:[#allocation6 + $0xd8] sm:$0xff]
    %v480 = vld [vmem:[#allocation6 + $0xe0] sm:$0xff]
    %v481 = vld [vmem:[#allocation6 + $0xe8] sm:$0xff]
    %v482 = vld [vmem:[#allocation6 + $0xf0] sm:$0xff]
    %v483 = vld [vmem:[#allocation6 + $0xf8] sm:$0xff]
    %v484 = vld [vmem:[%s6] sm:$0x3]
    %v486 = vperm.slane %v484, 0
    %v487 = vperm.slane %v484, 1
    %v522 = vunpack.c.l.b16 %v452
    %v523 = vunpack.c.h.b16 %v452
    %v524 = vunpack.c.l.b16 %v453
    %v525 = vunpack.c.h.b16 %v453
    %v526 = vunpack.c.l.b16 %v454
    %v527 = vunpack.c.h.b16 %v454
    %v528 = vunpack.c.l.b16 %v455
    %v529 = vunpack.c.h.b16 %v455
    %v530 = vunpack.c.l.b16 %v456
    %v531 = vunpack.c.h.b16 %v456
    %v532 = vunpack.c.l.b16 %v457
    %v533 = vunpack.c.h.b16 %v457
    %v534 = vunpack.c.l.b16 %v458
    %v535 = vunpack.c.h.b16 %v458
    %v536 = vunpack.c.l.b16 %v459
    %v537 = vunpack.c.h.b16 %v459
    %v538 = vunpack.c.l.b16 %v460
    %v539 = vunpack.c.h.b16 %v460
    %v540 = vunpack.c.l.b16 %v461
    %v541 = vunpack.c.h.b16 %v461
    %v542 = vunpack.c.l.b16 %v462
    %v543 = vunpack.c.h.b16 %v462
    %v544 = vunpack.c.l.b16 %v463
    %v545 = vunpack.c.h.b16 %v463
    %v546 = vunpack.c.l.b16 %v464
    %v547 = vunpack.c.h.b16 %v464
    %v548 = vunpack.c.l.b16 %v465
    %v549 = vunpack.c.h.b16 %v465
    %v550 = vunpack.c.l.b16 %v466
    %v551 = vunpack.c.h.b16 %v466
    %v552 = vunpack.c.l.b16 %v467
    %v553 = vunpack.c.h.b16 %v467
    %v554 = vunpack.c.l.b16 %v468
    %v555 = vunpack.c.h.b16 %v468
    %v556 = vunpack.c.l.b16 %v469
    %v557 = vunpack.c.h.b16 %v469
    %v558 = vunpack.c.l.b16 %v470
    %v559 = vunpack.c.h.b16 %v470
    %v560 = vunpack.c.l.b16 %v471
    %v561 = vunpack.c.h.b16 %v471
    %v562 = vunpack.c.l.b16 %v472
    %v563 = vunpack.c.h.b16 %v472
    %v564 = vunpack.c.l.b16 %v473
    %v565 = vunpack.c.h.b16 %v473
    %v566 = vunpack.c.l.b16 %v474
    %v567 = vunpack.c.h.b16 %v474
    %v568 = vunpack.c.l.b16 %v475
    %v569 = vunpack.c.h.b16 %v475
    %v570 = vunpack.c.l.b16 %v476
    %v571 = vunpack.c.h.b16 %v476
    %v572 = vunpack.c.l.b16 %v477
    %v573 = vunpack.c.h.b16 %v477
    %v574 = vunpack.c.l.b16 %v478
    %v575 = vunpack.c.h.b16 %v478
    %v576 = vunpack.c.l.b16 %v479
    %v577 = vunpack.c.h.b16 %v479
    %v578 = vunpack.c.l.b16 %v480
    %v579 = vunpack.c.h.b16 %v480
    %v580 = vunpack.c.l.b16 %v481
    %v581 = vunpack.c.h.b16 %v481
    %v582 = vunpack.c.l.b16 %v482
    %v583 = vunpack.c.h.b16 %v482
    %v584 = vunpack.c.l.b16 %v483
    %v585 = vunpack.c.h.b16 %v483
    %v586 = vpack.c.b16 %v524, %v522
    %v587 = vpack.c.b16 %v525, %v523
    %v588 = vpack.c.b16 %v528, %v526
    %v589 = vpack.c.b16 %v529, %v527
    %v590 = vpack.c.b16 %v532, %v530
    %v591 = vpack.c.b16 %v533, %v531
    %v592 = vpack.c.b16 %v536, %v534
    %v593 = vpack.c.b16 %v537, %v535
    %v594 = vpack.c.b16 %v540, %v538
    %v595 = vpack.c.b16 %v541, %v539
    %v596 = vpack.c.b16 %v544, %v542
    %v597 = vpack.c.b16 %v545, %v543
    %v598 = vpack.c.b16 %v548, %v546
    %v599 = vpack.c.b16 %v549, %v547
    %v600 = vpack.c.b16 %v552, %v550
    %v601 = vpack.c.b16 %v553, %v551
    %v602 = vpack.c.b16 %v556, %v554
    %v603 = vpack.c.b16 %v557, %v555
    %v604 = vpack.c.b16 %v560, %v558
    %v605 = vpack.c.b16 %v561, %v559
    %v606 = vpack.c.b16 %v564, %v562
    %v607 = vpack.c.b16 %v565, %v563
    %v608 = vpack.c.b16 %v568, %v566
    %v609 = vpack.c.b16 %v569, %v567
    %v610 = vpack.c.b16 %v572, %v570
    %v611 = vpack.c.b16 %v573, %v571
    %v612 = vpack.c.b16 %v576, %v574
    %v613 = vpack.c.b16 %v577, %v575
    %v614 = vpack.c.b16 %v580, %v578
    %v615 = vpack.c.b16 %v581, %v579
    %v616 = vpack.c.b16 %v584, %v582
    %v617 = vpack.c.b16 %v585, %v583
    %650 = vmatpush.bf16.msra.mxu0 %v600
    %651 = vmatpush.bf16.msra.mxu0 %v598
    %652 = vmatpush.bf16.msra.mxu0 %v596
    %653 = vmatpush.bf16.msra.mxu0 %v594
    %654 = vmatpush.bf16.msra.mxu0 %v592
    %655 = vmatpush.bf16.msra.mxu0 %v590
    %656 = vmatpush.bf16.msra.mxu0 %v588
    %657 = vmatpush.bf16.msra.mxu0 %v586
    %658 = vmatmul.bf16.gmra.mxu0 %v450
    %v659 = vpop.f32.mrf.mxu0
    %v660 = vadd.f32 %v486, %v659
    %v661 = vpop.f32.mrf.mxu0
    %v662 = vadd.f32 %v486, %v661
    %663 = vdwg.mxu0
    %664 = vmatpush.bf16.msra.mxu0 %v616
    %665 = vmatpush.bf16.msra.mxu0 %v614
    %666 = vmatpush.bf16.msra.mxu0 %v612
    %667 = vmatpush.bf16.msra.mxu0 %v610
    %668 = vmatpush.bf16.msra.mxu0 %v608
    %669 = vmatpush.bf16.msra.mxu0 %v606
    %670 = vmatpush.bf16.msra.mxu0 %v604
    %671 = vmatpush.bf16.msra.mxu0 %v602
    %672 = vmatmul.bf16.gmra.mxu0 %v451
    %v673 = vpop.f32.mrf.mxu0
    %v674 = vadd.f32 %v660, %v673
    %v675 = vpop.f32.mrf.mxu0
    %v676 = vadd.f32 %v662, %v675
    %677 = vdwg.mxu0
    %678 = vmatpush.bf16.msra.mxu0 %v601
    %679 = vmatpush.bf16.msra.mxu0 %v599
    %680 = vmatpush.bf16.msra.mxu0 %v597
    %681 = vmatpush.bf16.msra.mxu0 %v595
    %682 = vmatpush.bf16.msra.mxu0 %v593
    %683 = vmatpush.bf16.msra.mxu0 %v591
    %684 = vmatpush.bf16.msra.mxu0 %v589
    %685 = vmatpush.bf16.msra.mxu0 %v587
    %686 = vmatmul.bf16.gmra.mxu0 %v450
    %v687 = vpop.f32.mrf.mxu0
    %v688 = vadd.f32 %v487, %v687
    %v689 = vpop.f32.mrf.mxu0
    %v690 = vadd.f32 %v487, %v689
    %691 = vdwg.mxu0
    %692 = vmatpush.bf16.msra.mxu0 %v617
    %693 = vmatpush.bf16.msra.mxu0 %v615
    %694 = vmatpush.bf16.msra.mxu0 %v613
    %695 = vmatpush.bf16.msra.mxu0 %v611
    %696 = vmatpush.bf16.msra.mxu0 %v609
    %697 = vmatpush.bf16.msra.mxu0 %v607
    %698 = vmatpush.bf16.msra.mxu0 %v605
    %699 = vmatpush.bf16.msra.mxu0 %v603
    %700 = vmatmul.bf16.gmra.mxu0 %v451
    %v701 = vpop.f32.mrf.mxu0
    %v702 = vadd.f32 %v688, %v701
    %v703 = vpop.f32.mrf.mxu0
    %v704 = vadd.f32 %v690, %v703
    %705 = vdwg.mxu0
    %v706 = vmax.f32 %v674, 0.0
    %v707 = vmax.f32 %v702, 0.0
    %v708 = vmax.f32 %v676, 0.0
    %v709 = vmax.f32 %v704, 0.0
    %v710 = vpack.c.bf16 %v708, %v706
    %v711 = vpack.c.bf16 %v709, %v707
    %v712 = vld [vmem:[#allocation7] sm:$0xff]
    %v713 = vld [vmem:[#allocation7 + $0x8] sm:$0xff]
    %v714 = vld [vmem:[#allocation7 + $0x10] sm:$0xff]
    %v715 = vld [vmem:[#allocation7 + $0x18] sm:$0xff]
    %v716 = vld [vmem:[#allocation7 + $0x20] sm:$0xff]
    %v717 = vld [vmem:[#allocation7 + $0x28] sm:$0xff]
    %v718 = vld [vmem:[#allocation7 + $0x30] sm:$0xff]
    %v719 = vld [vmem:[#allocation7 + $0x38] sm:$0xff]
    %v720 = vld [vmem:[#allocation7 + $0x40] sm:$0xff]
    %v721 = vld [vmem:[#allocation7 + $0x48] sm:$0xff]
    %v722 = vld [vmem:[#allocation7 + $0x50] sm:$0xff]
    %v723 = vld [vmem:[#allocation7 + $0x58] sm:$0xff]
    %v724 = vld [vmem:[#allocation7 + $0x60] sm:$0xff]
    %v725 = vld [vmem:[#allocation7 + $0x68] sm:$0xff]
    %v726 = vld [vmem:[#allocation7 + $0x70] sm:$0xff]
    %v727 = vld [vmem:[#allocation7 + $0x78] sm:$0xff]
    %v728 = vld [vmem:[#allocation7 + $0x80] sm:$0xff]
    %v729 = vld [vmem:[#allocation7 + $0x88] sm:$0xff]
    %v730 = vld [vmem:[#allocation7 + $0x90] sm:$0xff]
    %v731 = vld [vmem:[#allocation7 + $0x98] sm:$0xff]
    %v732 = vld [vmem:[#allocation7 + $0xa0] sm:$0xff]
    %v733 = vld [vmem:[#allocation7 + $0xa8] sm:$0xff]
    %v734 = vld [vmem:[#allocation7 + $0xb0] sm:$0xff]
    %v735 = vld [vmem:[#allocation7 + $0xb8] sm:$0xff]
    %v736 = vld [vmem:[#allocation7 + $0xc0] sm:$0xff]
    %v737 = vld [vmem:[#allocation7 + $0xc8] sm:$0xff]
    %v738 = vld [vmem:[#allocation7 + $0xd0] sm:$0xff]
    %v739 = vld [vmem:[#allocation7 + $0xd8] sm:$0xff]
    %v740 = vld [vmem:[#allocation7 + $0xe0] sm:$0xff]
    %v741 = vld [vmem:[#allocation7 + $0xe8] sm:$0xff]
    %v742 = vld [vmem:[#allocation7 + $0xf0] sm:$0xff]
    %v743 = vld [vmem:[#allocation7 + $0xf8] sm:$0xff]
    %v744 = vld [vmem:[%s8] sm:$0x3]
    %v746 = vperm.slane %v744, 0
    %v747 = vperm.slane %v744, 1
    %v782 = vunpack.c.l.b16 %v712
    %v783 = vunpack.c.h.b16 %v712
    %v784 = vunpack.c.l.b16 %v713
    %v785 = vunpack.c.h.b16 %v713
    %v786 = vunpack.c.l.b16 %v714
    %v787 = vunpack.c.h.b16 %v714
    %v788 = vunpack.c.l.b16 %v715
    %v789 = vunpack.c.h.b16 %v715
    %v790 = vunpack.c.l.b16 %v716
    %v791 = vunpack.c.h.b16 %v716
    %v792 = vunpack.c.l.b16 %v717
    %v793 = vunpack.c.h.b16 %v717
    %v794 = vunpack.c.l.b16 %v718
    %v795 = vunpack.c.h.b16 %v718
    %v796 = vunpack.c.l.b16 %v719
    %v797 = vunpack.c.h.b16 %v719
    %v798 = vunpack.c.l.b16 %v720
    %v799 = vunpack.c.h.b16 %v720
    %v800 = vunpack.c.l.b16 %v721
    %v801 = vunpack.c.h.b16 %v721
    %v802 = vunpack.c.l.b16 %v722
    %v803 = vunpack.c.h.b16 %v722
    %v804 = vunpack.c.l.b16 %v723
    %v805 = vunpack.c.h.b16 %v723
    %v806 = vunpack.c.l.b16 %v724
    %v807 = vunpack.c.h.b16 %v724
    %v808 = vunpack.c.l.b16 %v725
    %v809 = vunpack.c.h.b16 %v725
    %v810 = vunpack.c.l.b16 %v726
    %v811 = vunpack.c.h.b16 %v726
    %v812 = vunpack.c.l.b16 %v727
    %v813 = vunpack.c.h.b16 %v727
    %v814 = vunpack.c.l.b16 %v728
    %v815 = vunpack.c.h.b16 %v728
    %v816 = vunpack.c.l.b16 %v729
    %v817 = vunpack.c.h.b16 %v729
    %v818 = vunpack.c.l.b16 %v730
    %v819 = vunpack.c.h.b16 %v730
    %v820 = vunpack.c.l.b16 %v731
    %v821 = vunpack.c.h.b16 %v731
    %v822 = vunpack.c.l.b16 %v732
    %v823 = vunpack.c.h.b16 %v732
    %v824 = vunpack.c.l.b16 %v733
    %v825 = vunpack.c.h.b16 %v733
    %v826 = vunpack.c.l.b16 %v734
    %v827 = vunpack.c.h.b16 %v734
    %v828 = vunpack.c.l.b16 %v735
    %v829 = vunpack.c.h.b16 %v735
    %v830 = vunpack.c.l.b16 %v736
    %v831 = vunpack.c.h.b16 %v736
    %v832 = vunpack.c.l.b16 %v737
    %v833 = vunpack.c.h.b16 %v737
    %v834 = vunpack.c.l.b16 %v738
    %v835 = vunpack.c.h.b16 %v738
    %v836 = vunpack.c.l.b16 %v739
    %v837 = vunpack.c.h.b16 %v739
    %v838 = vunpack.c.l.b16 %v740
    %v839 = vunpack.c.h.b16 %v740
    %v840 = vunpack.c.l.b16 %v741
    %v841 = vunpack.c.h.b16 %v741
    %v842 = vunpack.c.l.b16 %v742
    %v843 = vunpack.c.h.b16 %v742
    %v844 = vunpack.c.l.b16 %v743
    %v845 = vunpack.c.h.b16 %v743
    %v846 = vpack.c.b16 %v784, %v782
    %v847 = vpack.c.b16 %v785, %v783
    %v848 = vpack.c.b16 %v788, %v786
    %v849 = vpack.c.b16 %v789, %v787
    %v850 = vpack.c.b16 %v792, %v790
    %v851 = vpack.c.b16 %v793, %v791
    %v852 = vpack.c.b16 %v796, %v794
    %v853 = vpack.c.b16 %v797, %v795
    %v854 = vpack.c.b16 %v800, %v798
    %v855 = vpack.c.b16 %v801, %v799
    %v856 = vpack.c.b16 %v804, %v802
    %v857 = vpack.c.b16 %v805, %v803
    %v858 = vpack.c.b16 %v808, %v806
    %v859 = vpack.c.b16 %v809, %v807
    %v860 = vpack.c.b16 %v812, %v810
    %v861 = vpack.c.b16 %v813, %v811
    %v862 = vpack.c.b16 %v816, %v814
    %v863 = vpack.c.b16 %v817, %v815
    %v864 = vpack.c.b16 %v820, %v818
    %v865 = vpack.c.b16 %v821, %v819
    %v866 = vpack.c.b16 %v824, %v822
    %v867 = vpack.c.b16 %v825, %v823
    %v868 = vpack.c.b16 %v828, %v826
    %v869 = vpack.c.b16 %v829, %v827
    %v870 = vpack.c.b16 %v832, %v830
    %v871 = vpack.c.b16 %v833, %v831
    %v872 = vpack.c.b16 %v836, %v834
    %v873 = vpack.c.b16 %v837, %v835
    %v874 = vpack.c.b16 %v840, %v838
    %v875 = vpack.c.b16 %v841, %v839
    %v876 = vpack.c.b16 %v844, %v842
    %v877 = vpack.c.b16 %v845, %v843
    %910 = vmatpush.bf16.msra.mxu0 %v860
    %911 = vmatpush.bf16.msra.mxu0 %v858
    %912 = vmatpush.bf16.msra.mxu0 %v856
    %913 = vmatpush.bf16.msra.mxu0 %v854
    %914 = vmatpush.bf16.msra.mxu0 %v852
    %915 = vmatpush.bf16.msra.mxu0 %v850
    %916 = vmatpush.bf16.msra.mxu0 %v848
    %917 = vmatpush.bf16.msra.mxu0 %v846
    %918 = vmatmul.bf16.gmra.mxu0 %v710
    %v919 = vpop.f32.mrf.mxu0
    %v920 = vadd.f32 %v746, %v919
    %v921 = vpop.f32.mrf.mxu0
    %v922 = vadd.f32 %v746, %v921
    %923 = vdwg.mxu0
    %924 = vmatpush.bf16.msra.mxu0 %v876
    %925 = vmatpush.bf16.msra.mxu0 %v874
    %926 = vmatpush.bf16.msra.mxu0 %v872
    %927 = vmatpush.bf16.msra.mxu0 %v870
    %928 = vmatpush.bf16.msra.mxu0 %v868
    %929 = vmatpush.bf16.msra.mxu0 %v866
    %930 = vmatpush.bf16.msra.mxu0 %v864
    %931 = vmatpush.bf16.msra.mxu0 %v862
    %932 = vmatmul.bf16.gmra.mxu0 %v711
    %v933 = vpop.f32.mrf.mxu0
    %v934 = vadd.f32 %v920, %v933
    %v935 = vpop.f32.mrf.mxu0
    %v936 = vadd.f32 %v922, %v935
    %937 = vdwg.mxu0
    %938 = vmatpush.bf16.msra.mxu0 %v861
    %939 = vmatpush.bf16.msra.mxu0 %v859
    %940 = vmatpush.bf16.msra.mxu0 %v857
    %941 = vmatpush.bf16.msra.mxu0 %v855
    %942 = vmatpush.bf16.msra.mxu0 %v853
    %943 = vmatpush.bf16.msra.mxu0 %v851
    %944 = vmatpush.bf16.msra.mxu0 %v849
    %945 = vmatpush.bf16.msra.mxu0 %v847
    %946 = vmatmul.bf16.gmra.mxu0 %v710
    %v947 = vpop.f32.mrf.mxu0
    %v948 = vadd.f32 %v747, %v947
    %v949 = vpop.f32.mrf.mxu0
    %v950 = vadd.f32 %v747, %v949
    %951 = vdwg.mxu0
    %952 = vmatpush.bf16.msra.mxu0 %v877
    %953 = vmatpush.bf16.msra.mxu0 %v875
    %954 = vmatpush.bf16.msra.mxu0 %v873
    %955 = vmatpush.bf16.msra.mxu0 %v871
    %956 = vmatpush.bf16.msra.mxu0 %v869
    %957 = vmatpush.bf16.msra.mxu0 %v867
    %958 = vmatpush.bf16.msra.mxu0 %v865
    %959 = vmatpush.bf16.msra.mxu0 %v863
    %960 = vmatmul.bf16.gmra.mxu0 %v711
    %v961 = vpop.f32.mrf.mxu0
    %v962 = vadd.f32 %v948, %v961
    %v963 = vpop.f32.mrf.mxu0
    %v964 = vadd.f32 %v950, %v963
    %965 = vdwg.mxu0
    %v966 = vmax.f32 %v934, 0.0
    %v967 = vmax.f32 %v962, 0.0
    %v968 = vmax.f32 %v936, 0.0
    %v969 = vmax.f32 %v964, 0.0
    %v970 = vpack.c.bf16 %v968, %v966
    %v971 = vpack.c.bf16 %v969, %v967
    %v972 = vld [vmem:[#allocation9] sm:$0xf]
    %v973 = vld [vmem:[#allocation9 + $0x4] sm:$0xf]
    %v974 = vld [vmem:[#allocation9 + $0x8] sm:$0xf]
    %v975 = vld [vmem:[#allocation9 + $0xc] sm:$0xf]
    %v976 = vld [vmem:[#allocation9 + $0x10] sm:$0xf]
    %v977 = vld [vmem:[#allocation9 + $0x14] sm:$0xf]
    %v978 = vld [vmem:[#allocation9 + $0x18] sm:$0xf]
    %v979 = vld [vmem:[#allocation9 + $0x1c] sm:$0xf]
    %v980 = vld [vmem:[#allocation9 + $0x20] sm:$0xf]
    %v981 = vld [vmem:[#allocation9 + $0x24] sm:$0xf]
    %v982 = vld [vmem:[#allocation9 + $0x28] sm:$0xf]
    %v983 = vld [vmem:[#allocation9 + $0x2c] sm:$0xf]
    %v984 = vld [vmem:[#allocation9 + $0x30] sm:$0xf]
    %v985 = vld [vmem:[#allocation9 + $0x34] sm:$0xf]
    %v986 = vld [vmem:[#allocation9 + $0x38] sm:$0xf]
    %v987 = vld [vmem:[#allocation9 + $0x3c] sm:$0xf]
    %v988 = vld [vmem:[#allocation9 + $0x40] sm:$0xf]
    %v989 = vld [vmem:[#allocation9 + $0x44] sm:$0xf]
    %v990 = vld [vmem:[#allocation9 + $0x48] sm:$0xf]
    %v991 = vld [vmem:[#allocation9 + $0x4c] sm:$0xf]
    %v992 = vld [vmem:[#allocation9 + $0x50] sm:$0xf]
    %v993 = vld [vmem:[#allocation9 + $0x54] sm:$0xf]
    %v994 = vld [vmem:[#allocation9 + $0x58] sm:$0xf]
    %v995 = vld [vmem:[#allocation9 + $0x5c] sm:$0xf]
    %v996 = vld [vmem:[#allocation9 + $0x60] sm:$0xf]
    %v997 = vld [vmem:[#allocation9 + $0x64] sm:$0xf]
    %v998 = vld [vmem:[#allocation9 + $0x68] sm:$0xf]
    %v999 = vld [vmem:[#allocation9 + $0x6c] sm:$0xf]
    %v1000 = vld [vmem:[#allocation9 + $0x70] sm:$0xf]
    %v1001 = vld [vmem:[#allocation9 + $0x74] sm:$0xf]
    %v1002 = vld [vmem:[#allocation9 + $0x78] sm:$0xf]
    %v1003 = vld [vmem:[#allocation9 + $0x7c] sm:$0xf]
    %v1004 = vld [vmem:[%s10] sm:$0x1]
    %v1006 = vperm.slane %v1004, 0
    %v1040 = vunpack.c.l.b16 %v972
    %v1041 = vunpack.c.l.b16 %v973
    %v1042 = vunpack.c.l.b16 %v974
    %v1043 = vunpack.c.l.b16 %v975
    %v1044 = vunpack.c.l.b16 %v976
    %v1045 = vunpack.c.l.b16 %v977
    %v1046 = vunpack.c.l.b16 %v978
    %v1047 = vunpack.c.l.b16 %v979
    %v1048 = vunpack.c.l.b16 %v980
    %v1049 = vunpack.c.l.b16 %v981
    %v1050 = vunpack.c.l.b16 %v982
    %v1051 = vunpack.c.l.b16 %v983
    %v1052 = vunpack.c.l.b16 %v984
    %v1053 = vunpack.c.l.b16 %v985
    %v1054 = vunpack.c.l.b16 %v986
    %v1055 = vunpack.c.l.b16 %v987
    %v1056 = vunpack.c.l.b16 %v988
    %v1057 = vunpack.c.l.b16 %v989
    %v1058 = vunpack.c.l.b16 %v990
    %v1059 = vunpack.c.l.b16 %v991
    %v1060 = vunpack.c.l.b16 %v992
    %v1061 = vunpack.c.l.b16 %v993
    %v1062 = vunpack.c.l.b16 %v994
    %v1063 = vunpack.c.l.b16 %v995
    %v1064 = vunpack.c.l.b16 %v996
    %v1065 = vunpack.c.l.b16 %v997
    %v1066 = vunpack.c.l.b16 %v998
    %v1067 = vunpack.c.l.b16 %v999
    %v1068 = vunpack.c.l.b16 %v1000
    %v1069 = vunpack.c.l.b16 %v1001
    %v1070 = vunpack.c.l.b16 %v1002
    %v1071 = vunpack.c.l.b16 %v1003
    %v1072 = vpack.c.b16 %v1041, %v1040
    %v1073 = vpack.c.b16 %v1043, %v1042
    %v1074 = vpack.c.b16 %v1045, %v1044
    %v1075 = vpack.c.b16 %v1047, %v1046
    %v1076 = vpack.c.b16 %v1049, %v1048
    %v1077 = vpack.c.b16 %v1051, %v1050
    %v1078 = vpack.c.b16 %v1053, %v1052
    %v1079 = vpack.c.b16 %v1055, %v1054
    %v1080 = vpack.c.b16 %v1057, %v1056
    %v1081 = vpack.c.b16 %v1059, %v1058
    %v1082 = vpack.c.b16 %v1061, %v1060
    %v1083 = vpack.c.b16 %v1063, %v1062
    %v1084 = vpack.c.b16 %v1065, %v1064
    %v1085 = vpack.c.b16 %v1067, %v1066
    %v1086 = vpack.c.b16 %v1069, %v1068
    %v1087 = vpack.c.b16 %v1071, %v1070
    %1104 = vmatpush.bf16.msra.mxu0 %v1079
    %1105 = vmatpush.bf16.msra.mxu0 %v1078
    %1106 = vmatpush.bf16.msra.mxu0 %v1077
    %1107 = vmatpush.bf16.msra.mxu0 %v1076
    %1108 = vmatpush.bf16.msra.mxu0 %v1075
    %1109 = vmatpush.bf16.msra.mxu0 %v1074
    %1110 = vmatpush.bf16.msra.mxu0 %v1073
    %1111 = vmatpush.bf16.msra.mxu0 %v1072
    %1112 = vmatmul.bf16.gmra.mxu0 %v970
    %v1113 = vpop.f32.mrf.mxu0
    %v1114 = vadd.f32 %v1006, %v1113
    %v1115 = vpop.f32.mrf.mxu0
    %v1116 = vadd.f32 %v1006, %v1115
    %1117 = vdwg.mxu0
    %1118 = vmatpush.bf16.msra.mxu0 %v1087
    %1119 = vmatpush.bf16.msra.mxu0 %v1086
    %1120 = vmatpush.bf16.msra.mxu0 %v1085
    %1121 = vmatpush.bf16.msra.mxu0 %v1084
    %1122 = vmatpush.bf16.msra.mxu0 %v1083
    %1123 = vmatpush.bf16.msra.mxu0 %v1082
    %1124 = vmatpush.bf16.msra.mxu0 %v1081
    %1125 = vmatpush.bf16.msra.mxu0 %v1080
    %1126 = vmatmul.bf16.gmra.mxu0 %v971
    %v1127 = vpop.f32.mrf.mxu0
    %v1128 = vadd.f32 %v1114, %v1127
    %v1129 = vpop.f32.mrf.mxu0
    %v1130 = vadd.f32 %v1116, %v1129
    %1131 = vdwg.mxu0
    %1132 = vst [vmem:[%s11] sm:$0xff] %v1128
    %1133 = vst [vmem:[%s11 + $0x8] sm:$0xff] %v1130
    // Predicated region
    $region66: #{mlp_forward.1} parent=1 // pred_check
      _
    $region67: #{mlp_forward.1} parent=1 // pred_check_branch
      %1135 = sbr.rel (0) target = $region69
    $region68: #{mlp_forward.1} parent=1 // pred_region
      _
    $region69: #{mlp_forward.1} parent=1 // pred_fallthru
      _
    // Predicated region
    $region70: #{mlp_forward.1} parent=1 // pred_check
      _
    $region71: #{mlp_forward.1} parent=1 // pred_check_branch
      %1137 = sbr.rel (0) target = $region73
    $region72: #{mlp_forward.1} parent=1 // pred_region
      _
    $region73: #{mlp_forward.1} parent=1 // pred_fallthru
      _
    %1138 = vsyncpa [#allocation3], 1
    %1139 = vsyncpa [#allocation5], 1
    %1140 = vsyncpa [#allocation8], 1

</llo_original>
